<compile_context>
chip_gen: v7x
topology: tpu7x:2x2x1
jax: 0.10.0
libtpu: 0.0.40
codegen_flags: <defaults>
</compile_context>

<pallas_src>
import functools

import jax
import jax.numpy as jnp
from jax.experimental import pallas as pl

LANE = 128  # TPU lane width: logits axis is padded to a multiple of this.


# ---------------------------------------------------------------------------
# Fused kernel: block-diag 1x1 conv + bias + ReLU + GAP(sum) + linear head
# ---------------------------------------------------------------------------
def _fused_forward_kernel(x_ref, wct_ref, bc_ref, wh_ref, bh_ref, o_ref):
    """x_ref  : (C, B*HW)  f32  channels on sublanes, all pixels on lanes (dense)
       wct_ref: (F2, C)    f32  fused (block-diag) conv weight, transposed
       bc_ref : (F2, 1)    f32  fused conv bias (column)
       wh_ref : (F2, Kpad) f32  head weight pre-scaled by 1/HW, zero-padded lanes
       bh_ref : (1, Kpad)  f32  head bias, zero-padded
       o_ref  : (B, Kpad)  f32  logits; single dense store, caller slices [:, :K]
    """
    B, _ = o_ref.shape
    S = x_ref.shape[1]
    HW = S // B

    wh = wh_ref[...]  # (F2, Kpad) loaded once

    # (1) 1x1 conv for ALL B images in a single MXU matmul:
    #     (F2, C) @ (C, B*HW) -> (F2, B*HW); lanes stay dense (HW % 128 == 0).
    y = jnp.dot(wct_ref[...], x_ref[...], preferred_element_type=jnp.float32)
    # Bias + ReLU once on the whole tile (broadcast is hoisted by construction:
    # it is no longer inside a per-image loop).
    y = jnp.maximum(y + bc_ref[...], 0.0)

    # (2) Per-image GAP = lane-slice SUM (the 1/HW scale is folded into wh),
    #     then the tiny head; rows are collected and written with ONE dense
    #     (B, Kpad) store instead of B masked single-row stores.
    rows = []
    for b in range(B):                                   # B tiny & static -> unrolled
        feat_b = jnp.sum(y[:, b * HW:(b + 1) * HW], axis=1, keepdims=True)  # (F2, 1)
        # Head row: sum_f feat_b[f] * wh[f, :] -> (1, Kpad).
        # TODO(synk): for large B, assemble feats as a (B, F2) tile and do one
        # MXU matmul (B, F2) @ (F2, Kpad) instead of per-b sublane reductions.
        rows.append(jnp.sum(feat_b * wh, axis=0, keepdims=True))            # (1, Kpad)
    logits = jnp.concatenate(rows, axis=0) + bh_ref[...]                    # (B, Kpad)
    o_ref[...] = logits.astype(o_ref.dtype)              # single dense store


# ---------------------------------------------------------------------------
# One-time host-side weight preparation (OUT of the per-call forward path)
# ---------------------------------------------------------------------------
def prepare_fused_params(params, hw):
    """Block-diag fusion of the two branch convs, 1/HW fold, lane padding."""
    w_img, b_img = params["w_img"], params["b_img"]       # (3, F), (F,)
    w_var, b_var = params["w_var"], params["b_var"]       # (Cv, F), (F,)
    w_head, b_head = params["w_head"], params["b_head"]   # (2F, K), (K,)
    ci, f = w_img.shape
    cv = w_var.shape[0]
    f2 = 2 * f
    c = ci + cv
    k = w_head.shape[1]
    k_pad = ((k + LANE - 1) // LANE) * LANE

    wct = jnp.zeros((f2, c), jnp.float32)
    wct = wct.at[:f, :ci].set(w_img.T.astype(jnp.float32))   # imgs branch
    wct = wct.at[f:, ci:].set(w_var.T.astype(jnp.float32))   # img_variants branch
    bc = jnp.concatenate([b_img, b_var]).reshape(f2, 1).astype(jnp.float32)

    wh = jnp.zeros((f2, k_pad), jnp.float32).at[:, :k].set(
        (w_head / hw).astype(jnp.float32))
    bh = jnp.zeros((1, k_pad), jnp.float32).at[0, :k].set(b_head.astype(jnp.float32))
    return {"wct": wct, "bc": bc, "wh": wh, "bh": bh}


# ---------------------------------------------------------------------------
# GradCAMCompatibleModel.forward
# ---------------------------------------------------------------------------
@functools.partial(jax.jit, static_argnames=("num_classes",))
def gradcam_forward(batch_nchw, fused, num_classes):
    """batch_nchw: (B, C, H, W) with C > 3.  Returns logits (B, num_classes)."""
    B, C, H, W = batch_nchw.shape
    HW = H * W
    wct, bc, wh, bh = fused["wct"], fused["bc"], fused["wh"], fused["bh"]
    f2, kpad = wh.shape

    # batch[:, :3] / batch[:, 3:] split is absorbed by the block-diag conv weight.
    # Present the whole batch as a single (C, B*HW) matrix (one cheap transpose +
    # reshape) so the kernel issues ONE matmul for all images, with HW on the
    # lane axis for dense loads.
    x = jnp.transpose(batch_nchw.reshape(B, C, HW), (1, 0, 2)).reshape(C, B * HW)

    cost = pl.CostEstimate(
        flops=2 * f2 * C * B * HW + 2 * B * f2 * kpad,
        transcendentals=0,
        bytes_accessed=4 * (x.size + wct.size + bc.size + wh.size + bh.size
                            + B * kpad),
    )

    logits_padded = pl.pallas_call(
        _fused_forward_kernel,
        out_shape=jax.ShapeDtypeStruct((B, kpad), jnp.float32),
        cost_estimate=cost,
        # No grid: every operand is a single full block resident in VMEM
        # (~20 KiB total at these sizes).
        # TODO(synk): for realistic image/batch sizes add a grid over B
        # ("parallel", uses v7x's 2nd TensorCore) and HW ("arbitrary", with a
        # pl.when-guarded GAP accumulator), plus bf16 operands, so tiles fit
        # v7x's 64 MiB VMEM.
    )(x, wct, bc, wh, bh)
    return logits_padded[:, :num_classes]                  # result['logits']


# ---------------------------------------------------------------------------
# Pure-JAX reference (for correctness check)
# ---------------------------------------------------------------------------
def reference_forward(batch_nchw, params):
    imgs = batch_nchw[:, :3, :, :]
    variants = batch_nchw[:, 3:, :, :]

    def path(x, w, b):
        z = jnp.einsum("bchw,cf->bfhw", x, w) + b[None, :, None, None]
        z = jnp.maximum(z, 0.0)
        return z.mean(axis=(2, 3))

    f1 = path(imgs, params["w_img"], params["b_img"])
    f2 = path(variants, params["w_var"], params["b_var"])
    feat = jnp.concatenate([f1, f2], axis=-1)
    return feat @ params["w_head"] + params["b_head"]


if __name__ == "__main__":
    B, C, H, W = 2, 6, 16, 16        # imgs: 3 channels, img_variants: 3 channels
    F = 32                           # hidden features per branch
    K = 8                            # num classes (logits)

    key = jax.random.PRNGKey(0)
    k_x, k1, k2, k3, k4, k5, k6 = jax.random.split(key, 7)

    x = jax.random.normal(k_x, (B, C, H, W), dtype=jnp.float32)

    params = {
        "w_img": 0.1 * jax.random.normal(k1, (3, F), dtype=jnp.float32),
        "b_img": 0.1 * jax.random.normal(k2, (F,), dtype=jnp.float32),
        "w_var": 0.1 * jax.random.normal(k3, (C - 3, F), dtype=jnp.float32),
        "b_var": 0.1 * jax.random.normal(k4, (F,), dtype=jnp.float32),
        "w_head": 0.1 * jax.random.normal(k5, (2 * F, K), dtype=jnp.float32),
        "b_head": 0.1 * jax.random.normal(k6, (K,), dtype=jnp.float32),
    }

    # Weight fusion happens ONCE, outside the per-call forward path.
    fused = prepare_fused_params(params, H * W)

    logits = jax.block_until_ready(gradcam_forward(x, fused, K))
    ref = jax.block_until_ready(reference_forward(x, params))

    assert logits.shape == (B, K), logits.shape
    assert jnp.allclose(logits, ref, atol=1e-4, rtol=1e-4), (
        "Pallas result mismatch vs reference"
    )
    print("KERNEL_OK")
</pallas_src>

<mosaic_0001>
module attributes {stable_mosaic.version = 11 : i64} {
  func.func @_fused_forward_kernel(%arg0: memref<6x512xf32, #tpu.memory_space<vmem>>, %arg1: memref<64x6xf32, #tpu.memory_space<vmem>>, %arg2: memref<64x1xf32, #tpu.memory_space<vmem>>, %arg3: memref<64x128xf32, #tpu.memory_space<vmem>>, %arg4: memref<1x128xf32, #tpu.memory_space<vmem>>, %arg5: memref<2x128xf32, #tpu.memory_space<vmem>>) attributes {dimension_semantics = [], scalar_prefetch = 0 : i64, scratch_operands = 0 : i64, tpu.core_type = #tpu.core_type<tc>} {
    %c0 = arith.constant 0 : index
    %c0_0 = arith.constant 0 : index
    %0 = vector.load %arg3[%c0, %c0_0] : memref<64x128xf32, #tpu.memory_space<vmem>>, vector<64x128xf32>
    %c0_1 = arith.constant 0 : index
    %c0_2 = arith.constant 0 : index
    %1 = vector.load %arg1[%c0_1, %c0_2] : memref<64x6xf32, #tpu.memory_space<vmem>>, vector<64x6xf32>
    %c0_3 = arith.constant 0 : index
    %c0_4 = arith.constant 0 : index
    %2 = vector.load %arg0[%c0_3, %c0_4] : memref<6x512xf32, #tpu.memory_space<vmem>>, vector<6x512xf32>
    %cst = arith.constant dense<0.000000e+00> : vector<64x512xf32>
    %3 = tpu.matmul %1, %2, %cst {dimension_numbers = #tpu.dot_dimension_numbers<[1], [0], [0], [1], [0, 0, 1, 1], [], []>} : vector<64x6xf32>, vector<6x512xf32>, vector<64x512xf32> -> vector<64x512xf32>
    %c0_5 = arith.constant 0 : index
    %c0_6 = arith.constant 0 : index
    %4 = vector.load %arg2[%c0_5, %c0_6] : memref<64x1xf32, #tpu.memory_space<vmem>>, vector<64x1xf32>
    %5 = vector.broadcast %4 : vector<64x1xf32> to vector<64x512xf32>
    %6 = arith.addf %3, %5 : vector<64x512xf32>
    %cst_7 = arith.constant 0.000000e+00 : f32
    %7 = vector.broadcast %cst_7 : f32 to vector<64x512xf32>
    %8 = arith.maximumf %6, %7 : vector<64x512xf32>
    %9 = vector.extract_strided_slice %8 {offsets = [0, 0], sizes = [64, 256], strides = [1, 1]} : vector<64x512xf32> to vector<64x256xf32>
    %cst_8 = arith.constant dense<0.000000e+00> : vector<64xf32>
    %10 = vector.multi_reduction <add>, %9, %cst_8 [1] : vector<64x256xf32> to vector<64xf32>
    %11 = vector.shape_cast %10 : vector<64xf32> to vector<64x1xf32>
    %12 = vector.broadcast %11 : vector<64x1xf32> to vector<64x128xf32>
    %13 = arith.mulf %12, %0 : vector<64x128xf32>
    %cst_9 = arith.constant dense<0.000000e+00> : vector<128xf32>
    %14 = vector.multi_reduction <add>, %13, %cst_9 [0] : vector<64x128xf32> to vector<128xf32>
    %15 = vector.shape_cast %14 : vector<128xf32> to vector<1x128xf32>
    %16 = vector.extract_strided_slice %8 {offsets = [0, 256], sizes = [64, 256], strides = [1, 1]} : vector<64x512xf32> to vector<64x256xf32>
    %cst_10 = arith.constant dense<0.000000e+00> : vector<64xf32>
    %17 = vector.multi_reduction <add>, %16, %cst_10 [1] : vector<64x256xf32> to vector<64xf32>
    %18 = vector.shape_cast %17 : vector<64xf32> to vector<64x1xf32>
    %19 = vector.broadcast %18 : vector<64x1xf32> to vector<64x128xf32>
    %20 = arith.mulf %19, %0 : vector<64x128xf32>
    %cst_11 = arith.constant dense<0.000000e+00> : vector<128xf32>
    %21 = vector.multi_reduction <add>, %20, %cst_11 [0] : vector<64x128xf32> to vector<128xf32>
    %22 = vector.shape_cast %21 : vector<128xf32> to vector<1x128xf32>
    %23 = tpu.concatenate %15, %22 in 0 : vector<1x128xf32>, vector<1x128xf32> -> vector<2x128xf32>
    %c0_12 = arith.constant 0 : index
    %c0_13 = arith.constant 0 : index
    %24 = vector.load %arg4[%c0_12, %c0_13] : memref<1x128xf32, #tpu.memory_space<vmem>>, vector<1x128xf32>
    %25 = vector.broadcast %24 : vector<1x128xf32> to vector<2x128xf32>
    %26 = arith.addf %23, %25 : vector<2x128xf32>
    %c0_14 = arith.constant 0 : index
    %c0_15 = arith.constant 0 : index
    %27 = vector.load %arg5[%c0_14, %c0_15] : memref<2x128xf32, #tpu.memory_space<vmem>>, vector<2x128xf32>
    tpu.vector_store %arg5[%c0_14, %c0_15], %26 {strides = array<i32>} : memref<2x128xf32, #tpu.memory_space<vmem>>, vector<2x128xf32>,
    return
  }
}

</mosaic_0001>

<llo_original>
// kernel: gradcam_forward.1
$region0: #{gradcam_forward.1}
  #allocation0 [shape = 'u32[]', space=smem, size = 0x4, offset = 0x4, fixed_abs, tag = 'smem constant byte address 0x4 - core index']
  #allocation1 [shape = 'u32[144,128]{1,0:T(1,128)}', space=vmem, size = 0x12000, scoped, tag = 'internal scratch']
  %s0 = inlined_call_operand.vmem [shape: f32[6,512], index: 0, kind: input, shape index: {}]
  %s1 = inlined_call_operand.vmem [shape: f32[64,6], index: 1, kind: input, shape index: {}]
  %s2 = inlined_call_operand.vmem [shape: f32[64,1], index: 2, kind: input, shape index: {}]
  %s3 = inlined_call_operand.vmem [shape: f32[64,128], index: 3, kind: input, shape index: {}]
  %s4 = inlined_call_operand.vmem [shape: f32[1,128], index: 4, kind: input, shape index: {}]
  %s5 = inlined_call_operand.hbm [shape: f32[2,128], index: 5, kind: output, shape index: {}]
  %s6 = sld [smem:[#allocation0]]
  $region30: #{gradcam_forward.1} parent=0
    _
  %s8 = ssub.s32 1, %s6
  %s9 = scalar_select 0, %s8, %s6
  $region1: #{gradcam_forward.1} parent=0
    #allocation2 [shape = 'u8[1024]{0}', space=vmem, size = 0x400, scoped, tag = 'output window, operand 0, single buffered']
    #allocation3 [shape = 's32[1]{0}', space=sflag, size = 0x4, scoped, tag = 'scoped memory for gradcam_forward.1']
    %10 = vsyncpa [#allocation3], 0
    // Predicated region
    $region2: #{gradcam_forward.1} parent=1 // pred_check
      _
    $region3: #{gradcam_forward.1} parent=1 // pred_check_branch
      %12 = sbr.rel (0) target = $region5
    $region4: #{gradcam_forward.1} parent=1 // pred_region
      _
    $region5: #{gradcam_forward.1} parent=1 // pred_fallthru
      _
    // Predicated region
    $region6: #{gradcam_forward.1} parent=1 // pred_check
      _
    $region7: #{gradcam_forward.1} parent=1 // pred_check_branch
      %14 = sbr.rel (0) target = $region9
    $region8: #{gradcam_forward.1} parent=1 // pred_region
      _
    $region9: #{gradcam_forward.1} parent=1 // pred_fallthru
      _
    // Predicated region
    $region10: #{gradcam_forward.1} parent=1 // pred_check
      _
    $region11: #{gradcam_forward.1} parent=1 // pred_check_branch
      %16 = sbr.rel (0) target = $region13
    $region12: #{gradcam_forward.1} parent=1 // pred_region
      _
    $region13: #{gradcam_forward.1} parent=1 // pred_fallthru
      _
    // Predicated region
    $region14: #{gradcam_forward.1} parent=1 // pred_check
      _
    $region15: #{gradcam_forward.1} parent=1 // pred_check_branch
      %18 = sbr.rel (0) target = $region17
    $region16: #{gradcam_forward.1} parent=1 // pred_region
      _
    $region17: #{gradcam_forward.1} parent=1 // pred_fallthru
      _
    // Predicated region
    $region18: #{gradcam_forward.1} parent=1 // pred_check
      _
    $region19: #{gradcam_forward.1} parent=1 // pred_check_branch
      %20 = sbr.rel (0) target = $region21
    $region20: #{gradcam_forward.1} parent=1 // pred_region
      _
    $region21: #{gradcam_forward.1} parent=1 // pred_fallthru
      _
    %v21 = vld [vmem:[%s3] sm:$0xff]
    %v22 = vld [vmem:[%s3 + $0x8] sm:$0xff]
    %v23 = vld [vmem:[%s3 + $0x10] sm:$0xff]
    %v24 = vld [vmem:[%s3 + $0x18] sm:$0xff]
    %v25 = vld [vmem:[%s3 + $0x20] sm:$0xff]
    %v26 = vld [vmem:[%s3 + $0x28] sm:$0xff]
    %v27 = vld [vmem:[%s3 + $0x30] sm:$0xff]
    %v28 = vld [vmem:[%s3 + $0x38] sm:$0xff]
    %v29 = vld [vmem:[%s1] sm:$0xff]
    %v30 = vld [vmem:[%s1 + $0x8] sm:$0xff]
    %v31 = vld [vmem:[%s1 + $0x10] sm:$0xff]
    %v32 = vld [vmem:[%s1 + $0x18] sm:$0xff]
    %v33 = vld [vmem:[%s1 + $0x20] sm:$0xff]
    %v34 = vld [vmem:[%s1 + $0x28] sm:$0xff]
    %v35 = vld [vmem:[%s1 + $0x30] sm:$0xff]
    %v36 = vld [vmem:[%s1 + $0x38] sm:$0xff]
    %v37 = vld [vmem:[%s0] sm:$0x3f]
    %v38 = vld [vmem:[%s0 + $0x8] sm:$0x3f]
    %v39 = vld [vmem:[%s0 + $0x10] sm:$0x3f]
    %v40 = vld [vmem:[%s0 + $0x18] sm:$0x3f]
    %v41 = vld [vmem:[%s2] sm:$0xff]
    %v42 = vld [vmem:[%s2 + $0x8] sm:$0xff]
    %v43 = vld [vmem:[%s2 + $0x10] sm:$0xff]
    %v44 = vld [vmem:[%s2 + $0x18] sm:$0xff]
    %v45 = vld [vmem:[%s2 + $0x20] sm:$0xff]
    %v46 = vld [vmem:[%s2 + $0x28] sm:$0xff]
    %v47 = vld [vmem:[%s2 + $0x30] sm:$0xff]
    %v48 = vld [vmem:[%s2 + $0x38] sm:$0xff]
    %50 = vset.pattern.permute.xlu0 0
    %51 = vperm.xlu0 %50, %v41
    %v52 = vpop.permute.xlu0 %51
    %55 = vset.pattern.permute.xlu0 0
    %56 = vperm.xlu0 %55, %v42
    %v57 = vpop.permute.xlu0 %56
    %60 = vset.pattern.permute.xlu0 0
    %61 = vperm.xlu0 %60, %v43
    %v62 = vpop.permute.xlu0 %61
    %65 = vset.pattern.permute.xlu0 0
    %66 = vperm.xlu0 %65, %v44
    %v67 = vpop.permute.xlu0 %66
    %70 = vset.pattern.permute.xlu0 0
    %71 = vperm.xlu0 %70, %v45
    %v72 = vpop.permute.xlu0 %71
    %75 = vset.pattern.permute.xlu0 0
    %76 = vperm.xlu0 %75, %v46
    %v77 = vpop.permute.xlu0 %76
    %80 = vset.pattern.permute.xlu0 0
    %81 = vperm.xlu0 %80, %v47
    %v82 = vpop.permute.xlu0 %81
    %85 = vset.pattern.permute.xlu0 0
    %86 = vperm.xlu0 %85, %v48
    %v87 = vpop.permute.xlu0 %86
    %vm89 = vcmask 48128
    %v91 = vsel %vm89, %v29, 0
    %v94 = vsel %vm89, %v30, 0
    %v97 = vsel %vm89, %v31, 0
    %v100 = vsel %vm89, %v32, 0
    %v103 = vsel %vm89, %v33, 0
    %v106 = vsel %vm89, %v34, 0
    %v109 = vsel %vm89, %v35, 0
    %v112 = vsel %vm89, %v36, 0
    %vm114 = vcmask 1045504
    %v116 = vsel %vm114, %v37, 0
    %v119 = vsel %vm114, %v38, 0
    %v122 = vsel %vm114, %v39, 0
    %v125 = vsel %vm114, %v40, 0
    %127 = vmatprep.subr.mxu0 %v119
    %128 = vmatpush1.msra.mxu0 %v116
    %129 = vmatprep.subr.mxu0 0.0
    %130 = vmatpush1.msra.mxu0 0.0
    %131 = vmatprep.subr.mxu0 0.0
    %132 = vmatpush1.msra.mxu0 0.0
    %133 = vmatprep.subr.mxu0 0.0
    %134 = vmatpush1.msra.mxu0 0.0
    %135 = vmatprep.subr.mxu0 0.0
    %136 = vmatpush1.msra.mxu0 0.0
    %137 = vmatprep.subr.mxu0 0.0
    %138 = vmatpush1.msra.mxu0 0.0
    %139 = vmatprep.subr.mxu0 0.0
    %140 = vmatpush1.msra.mxu0 0.0
    %141 = vmatprep.subr.mxu0 0.0
    %142 = vmatpush1.msra.mxu0 0.0
    %143 = vmatprep.subr.mxu0 0.0
    %144 = vmatpush1.msra.mxu0 0.0
    %145 = vmatprep.subr.mxu0 0.0
    %146 = vmatpush1.msra.mxu0 0.0
    %147 = vmatprep.subr.mxu0 0.0
    %148 = vmatpush1.msra.mxu0 0.0
    %149 = vmatprep.subr.mxu0 0.0
    %150 = vmatpush1.msra.mxu0 0.0
    %151 = vmatprep.subr.mxu0 0.0
    %152 = vmatpush1.msra.mxu0 0.0
    %153 = vmatprep.subr.mxu0 0.0
    %154 = vmatpush1.msra.mxu0 0.0
    %155 = vmatprep.subr.mxu0 0.0
    %156 = vmatpush1.msra.mxu0 0.0
    %157 = vmatprep.subr.mxu0 0.0
    %158 = vmatpush1.msra.mxu0 0.0
    %159 = vmatprep.subr.mxu0 0.0
    %160 = vmatpush1.msra.mxu0 0.0
    %161 = vmatprep.subr.mxu0 0.0
    %162 = vmatpush1.msra.mxu0 0.0
    %163 = vmatprep.subr.mxu0 0.0
    %164 = vmatpush1.msra.mxu0 0.0
    %165 = vmatprep.subr.mxu0 0.0
    %166 = vmatpush1.msra.mxu0 0.0
    %167 = vmatprep.subr.mxu0 0.0
    %168 = vmatpush1.msra.mxu0 0.0
    %169 = vmatprep.subr.mxu0 0.0
    %170 = vmatpush1.msra.mxu0 0.0
    %171 = vmatprep.subr.mxu0 0.0
    %172 = vmatpush1.msra.mxu0 0.0
    %173 = vmatprep.subr.mxu0 0.0
    %174 = vmatpush1.msra.mxu0 0.0
    %175 = vmatprep.subr.mxu0 0.0
    %176 = vmatpush1.msra.mxu0 0.0
    %177 = vmatprep.subr.mxu0 0.0
    %178 = vmatpush1.msra.mxu0 0.0
    %179 = vmatprep.subr.mxu0 0.0
    %180 = vmatpush1.msra.mxu0 0.0
    %181 = vmatprep.subr.mxu0 0.0
    %182 = vmatpush1.msra.mxu0 0.0
    %183 = vmatprep.subr.mxu0 0.0
    %184 = vmatpush1.msra.mxu0 0.0
    %185 = vmatprep.subr.mxu0 0.0
    %186 = vmatpush1.msra.mxu0 0.0
    %187 = vmatprep.subr.mxu0 0.0
    %188 = vmatpush1.msra.mxu0 0.0
    %189 = vmatprep.subr.mxu0 0.0
    %190 = vmatpush1.msra.mxu0 0.0
    %191 = vmatprep.mubr.f32.mxu0 0.0
    %192 = vmatmul.mubr.f32.gmra.mrb[0].mxu0 %v91
    %v193 = vpop.f32.mrb[0].mxu0
    %v194 = vadd.f32 %v52, %v193
    %v195 = vpop.f32.mrb[0].mxu0
    %v196 = vadd.f32 %v52, %v195
    %197 = vmatprep.mubr.f32.mxu0 0.0
    %198 = vmatmul.mubr.f32.gmra.mrb[0].mxu0 %v94
    %v199 = vpop.f32.mrb[0].mxu0
    %v200 = vadd.f32 %v57, %v199
    %v201 = vpop.f32.mrb[0].mxu0
    %v202 = vadd.f32 %v57, %v201
    %203 = vmatprep.mubr.f32.mxu0 0.0
    %204 = vmatmul.mubr.f32.gmra.mrb[0].mxu0 %v97
    %v205 = vpop.f32.mrb[0].mxu0
    %v206 = vadd.f32 %v62, %v205
    %v207 = vpop.f32.mrb[0].mxu0
    %v208 = vadd.f32 %v62, %v207
    %209 = vmatprep.mubr.f32.mxu0 0.0
    %210 = vmatmul.mubr.f32.gmra.mrb[0].mxu0 %v100
    %v211 = vpop.f32.mrb[0].mxu0
    %v212 = vadd.f32 %v67, %v211
    %v213 = vpop.f32.mrb[0].mxu0
    %v214 = vadd.f32 %v67, %v213
    %215 = vmatprep.mubr.f32.mxu0 0.0
    %216 = vmatmul.mubr.f32.gmra.mrb[0].mxu0 %v103
    %v217 = vpop.f32.mrb[0].mxu0
    %v218 = vadd.f32 %v72, %v217
    %v219 = vpop.f32.mrb[0].mxu0
    %v220 = vadd.f32 %v72, %v219
    %221 = vmatprep.mubr.f32.mxu0 0.0
    %222 = vmatmul.mubr.f32.gmra.mrb[0].mxu0 %v106
    %v223 = vpop.f32.mrb[0].mxu0
    %v224 = vadd.f32 %v77, %v223
    %v225 = vpop.f32.mrb[0].mxu0
    %v226 = vadd.f32 %v77, %v225
    %227 = vmatprep.mubr.f32.mxu0 0.0
    %228 = vmatmul.mubr.f32.gmra.mrb[0].mxu0 %v109
    %v229 = vpop.f32.mrb[0].mxu0
    %v230 = vadd.f32 %v82, %v229
    %v231 = vpop.f32.mrb[0].mxu0
    %v232 = vadd.f32 %v82, %v231
    %233 = vmatprep.mubr.f32.mxu0 0.0
    %234 = vmatmul.mubr.f32.gmra.mrb[0].mxu0 %v112
    %v235 = vpop.f32.mrb[0].mxu0
    %v236 = vadd.f32 %v87, %v235
    %v237 = vpop.f32.mrb[0].mxu0
    %v238 = vadd.f32 %v87, %v237
    %239 = vdwg.mxu0
    %240 = vmatprep.subr.mxu0 %v125
    %241 = vmatpush1.msra.mxu0 %v122
    %242 = vmatprep.subr.mxu0 0.0
    %243 = vmatpush1.msra.mxu0 0.0
    %244 = vmatprep.subr.mxu0 0.0
    %245 = vmatpush1.msra.mxu0 0.0
    %246 = vmatprep.subr.mxu0 0.0
    %247 = vmatpush1.msra.mxu0 0.0
    %248 = vmatprep.subr.mxu0 0.0
    %249 = vmatpush1.msra.mxu0 0.0
    %250 = vmatprep.subr.mxu0 0.0
    %251 = vmatpush1.msra.mxu0 0.0
    %252 = vmatprep.subr.mxu0 0.0
    %253 = vmatpush1.msra.mxu0 0.0
    %254 = vmatprep.subr.mxu0 0.0
    %255 = vmatpush1.msra.mxu0 0.0
    %256 = vmatprep.subr.mxu0 0.0
    %257 = vmatpush1.msra.mxu0 0.0
    %258 = vmatprep.subr.mxu0 0.0
    %259 = vmatpush1.msra.mxu0 0.0
    %260 = vmatprep.subr.mxu0 0.0
    %261 = vmatpush1.msra.mxu0 0.0
    %262 = vmatprep.subr.mxu0 0.0
    %263 = vmatpush1.msra.mxu0 0.0
    %264 = vmatprep.subr.mxu0 0.0
    %265 = vmatpush1.msra.mxu0 0.0
    %266 = vmatprep.subr.mxu0 0.0
    %267 = vmatpush1.msra.mxu0 0.0
    %268 = vmatprep.subr.mxu0 0.0
    %269 = vmatpush1.msra.mxu0 0.0
    %270 = vmatprep.subr.mxu0 0.0
    %271 = vmatpush1.msra.mxu0 0.0
    %272 = vmatprep.subr.mxu0 0.0
    %273 = vmatpush1.msra.mxu0 0.0
    %274 = vmatprep.subr.mxu0 0.0
    %275 = vmatpush1.msra.mxu0 0.0
    %276 = vmatprep.subr.mxu0 0.0
    %277 = vmatpush1.msra.mxu0 0.0
    %278 = vmatprep.subr.mxu0 0.0
    %279 = vmatpush1.msra.mxu0 0.0
    %280 = vmatprep.subr.mxu0 0.0
    %281 = vmatpush1.msra.mxu0 0.0
    %282 = vmatprep.subr.mxu0 0.0
    %283 = vmatpush1.msra.mxu0 0.0
    %284 = vmatprep.subr.mxu0 0.0
    %285 = vmatpush1.msra.mxu0 0.0
    %286 = vmatprep.subr.mxu0 0.0
    %287 = vmatpush1.msra.mxu0 0.0
    %288 = vmatprep.subr.mxu0 0.0
    %289 = vmatpush1.msra.mxu0 0.0
    %290 = vmatprep.subr.mxu0 0.0
    %291 = vmatpush1.msra.mxu0 0.0
    %292 = vmatprep.subr.mxu0 0.0
    %293 = vmatpush1.msra.mxu0 0.0
    %294 = vmatprep.subr.mxu0 0.0
    %295 = vmatpush1.msra.mxu0 0.0
    %296 = vmatprep.subr.mxu0 0.0
    %297 = vmatpush1.msra.mxu0 0.0
    %298 = vmatprep.subr.mxu0 0.0
    %299 = vmatpush1.msra.mxu0 0.0
    %300 = vmatprep.subr.mxu0 0.0
    %301 = vmatpush1.msra.mxu0 0.0
    %302 = vmatprep.subr.mxu0 0.0
    %303 = vmatpush1.msra.mxu0 0.0
    %304 = vmatprep.mubr.f32.mxu0 0.0
    %305 = vmatmul.mubr.f32.gmra.mrb[0].mxu0 %v91
    %v306 = vpop.f32.mrb[0].mxu0
    %v307 = vadd.f32 %v52, %v306
    %v308 = vpop.f32.mrb[0].mxu0
    %v309 = vadd.f32 %v52, %v308
    %310 = vmatprep.mubr.f32.mxu0 0.0
    %311 = vmatmul.mubr.f32.gmra.mrb[0].mxu0 %v94
    %v312 = vpop.f32.mrb[0].mxu0
    %v313 = vadd.f32 %v57, %v312
    %v314 = vpop.f32.mrb[0].mxu0
    %v315 = vadd.f32 %v57, %v314
    %316 = vmatprep.mubr.f32.mxu0 0.0
    %317 = vmatmul.mubr.f32.gmra.mrb[0].mxu0 %v97
    %v318 = vpop.f32.mrb[0].mxu0
    %v319 = vadd.f32 %v62, %v318
    %v320 = vpop.f32.mrb[0].mxu0
    %v321 = vadd.f32 %v62, %v320
    %322 = vmatprep.mubr.f32.mxu0 0.0
    %323 = vmatmul.mubr.f32.gmra.mrb[0].mxu0 %v100
    %v324 = vpop.f32.mrb[0].mxu0
    %v325 = vadd.f32 %v67, %v324
    %v326 = vpop.f32.mrb[0].mxu0
    %v327 = vadd.f32 %v67, %v326
    %328 = vmatprep.mubr.f32.mxu0 0.0
    %329 = vmatmul.mubr.f32.gmra.mrb[0].mxu0 %v103
    %v330 = vpop.f32.mrb[0].mxu0
    %v331 = vadd.f32 %v72, %v330
    %v332 = vpop.f32.mrb[0].mxu0
    %v333 = vadd.f32 %v72, %v332
    %334 = vmatprep.mubr.f32.mxu0 0.0
    %335 = vmatmul.mubr.f32.gmra.mrb[0].mxu0 %v106
    %v336 = vpop.f32.mrb[0].mxu0
    %v337 = vadd.f32 %v77, %v336
    %v338 = vpop.f32.mrb[0].mxu0
    %v339 = vadd.f32 %v77, %v338
    %340 = vmatprep.mubr.f32.mxu0 0.0
    %341 = vmatmul.mubr.f32.gmra.mrb[0].mxu0 %v109
    %v342 = vpop.f32.mrb[0].mxu0
    %v343 = vadd.f32 %v82, %v342
    %v344 = vpop.f32.mrb[0].mxu0
    %v345 = vadd.f32 %v82, %v344
    %346 = vmatprep.mubr.f32.mxu0 0.0
    %347 = vmatmul.mubr.f32.gmra.mrb[0].mxu0 %v112
    %v348 = vpop.f32.mrb[0].mxu0
    %v349 = vadd.f32 %v87, %v348
    %v350 = vpop.f32.mrb[0].mxu0
    %v351 = vadd.f32 %v87, %v350
    %352 = vdwg.mxu0
    %v353 = vmax.f32 %v194, 0.0
    %v354 = vmax.f32 %v196, 0.0
    %v355 = vmax.f32 %v307, 0.0
    %v356 = vmax.f32 %v309, 0.0
    %v357 = vmax.f32 %v200, 0.0
    %v358 = vmax.f32 %v202, 0.0
    %v359 = vmax.f32 %v313, 0.0
    %v360 = vmax.f32 %v315, 0.0
    %v361 = vmax.f32 %v206, 0.0
    %v362 = vmax.f32 %v208, 0.0
    %v363 = vmax.f32 %v319, 0.0
    %v364 = vmax.f32 %v321, 0.0
    %v365 = vmax.f32 %v212, 0.0
    %v366 = vmax.f32 %v214, 0.0
    %v367 = vmax.f32 %v325, 0.0
    %v368 = vmax.f32 %v327, 0.0
    %v369 = vmax.f32 %v218, 0.0
    %v370 = vmax.f32 %v220, 0.0
    %v371 = vmax.f32 %v331, 0.0
    %v372 = vmax.f32 %v333, 0.0
    %v373 = vmax.f32 %v224, 0.0
    %v374 = vmax.f32 %v226, 0.0
    %v375 = vmax.f32 %v337, 0.0
    %v376 = vmax.f32 %v339, 0.0
    %v377 = vmax.f32 %v230, 0.0
    %v378 = vmax.f32 %v232, 0.0
    %v379 = vmax.f32 %v343, 0.0
    %v380 = vmax.f32 %v345, 0.0
    %v381 = vmax.f32 %v236, 0.0
    %v382 = vmax.f32 %v238, 0.0
    %v383 = vmax.f32 %v349, 0.0
    %v384 = vmax.f32 %v351, 0.0
    %v385 = vadd.f32 %v353, %v354
    %386 = vadd.xlane.f32.xlu0 %v385
    %v387 = vpop.xlane.xlu0 %386
    %v388 = vadd.f32 %v357, %v358
    %389 = vadd.xlane.f32.xlu0 %v388
    %v390 = vpop.xlane.xlu0 %389
    %v391 = vadd.f32 %v361, %v362
    %392 = vadd.xlane.f32.xlu0 %v391
    %v393 = vpop.xlane.xlu0 %392
    %v394 = vadd.f32 %v365, %v366
    %395 = vadd.xlane.f32.xlu0 %v394
    %v396 = vpop.xlane.xlu0 %395
    %v397 = vadd.f32 %v369, %v370
    %398 = vadd.xlane.f32.xlu0 %v397
    %v399 = vpop.xlane.xlu0 %398
    %v400 = vadd.f32 %v373, %v374
    %401 = vadd.xlane.f32.xlu0 %v400
    %v402 = vpop.xlane.xlu0 %401
    %v403 = vadd.f32 %v377, %v378
    %404 = vadd.xlane.f32.xlu0 %v403
    %v405 = vpop.xlane.xlu0 %404
    %v406 = vadd.f32 %v381, %v382
    %407 = vadd.xlane.f32.xlu0 %v406
    %v408 = vpop.xlane.xlu0 %407
    %v409 = vmul.f32 %v387, %v21
    %v410 = vmul.f32 %v390, %v22
    %v411 = vmul.f32 %v393, %v23
    %v412 = vmul.f32 %v396, %v24
    %v413 = vmul.f32 %v399, %v25
    %v414 = vmul.f32 %v402, %v26
    %v415 = vmul.f32 %v405, %v27
    %v416 = vmul.f32 %v408, %v28
    %v417 = vadd.f32 %v409, %v410
    %v418 = vadd.f32 %v417, %v411
    %v419 = vadd.f32 %v418, %v412
    %v420 = vadd.f32 %v419, %v413
    %v421 = vadd.f32 %v420, %v414
    %v422 = vadd.f32 %v421, %v415
    %v423 = vadd.f32 %v422, %v416
    %v424 = vrot.slane %v423, 4
    %v425 = vadd.f32 %v423, %v424
    %v426 = vrot.slane %v425, 2
    %v427 = vadd.f32 %v425, %v426
    %v428 = vrot.slane %v427, 1
    %v429 = vadd.f32 %v427, %v428
    %v430 = vadd.f32 %v355, %v356
    %431 = vadd.xlane.f32.xlu0 %v430
    %v432 = vpop.xlane.xlu0 %431
    %v433 = vadd.f32 %v359, %v360
    %434 = vadd.xlane.f32.xlu0 %v433
    %v435 = vpop.xlane.xlu0 %434
    %v436 = vadd.f32 %v363, %v364
    %437 = vadd.xlane.f32.xlu0 %v436
    %v438 = vpop.xlane.xlu0 %437
    %v439 = vadd.f32 %v367, %v368
    %440 = vadd.xlane.f32.xlu0 %v439
    %v441 = vpop.xlane.xlu0 %440
    %v442 = vadd.f32 %v371, %v372
    %443 = vadd.xlane.f32.xlu0 %v442
    %v444 = vpop.xlane.xlu0 %443
    %v445 = vadd.f32 %v375, %v376
    %446 = vadd.xlane.f32.xlu0 %v445
    %v447 = vpop.xlane.xlu0 %446
    %v448 = vadd.f32 %v379, %v380
    %449 = vadd.xlane.f32.xlu0 %v448
    %v450 = vpop.xlane.xlu0 %449
    %v451 = vadd.f32 %v383, %v384
    %452 = vadd.xlane.f32.xlu0 %v451
    %v453 = vpop.xlane.xlu0 %452
    %v454 = vmul.f32 %v432, %v21
    %v455 = vmul.f32 %v435, %v22
    %v456 = vmul.f32 %v438, %v23
    %v457 = vmul.f32 %v441, %v24
    %v458 = vmul.f32 %v444, %v25
    %v459 = vmul.f32 %v447, %v26
    %v460 = vmul.f32 %v450, %v27
    %v461 = vmul.f32 %v453, %v28
    %v462 = vadd.f32 %v454, %v455
    %v463 = vadd.f32 %v462, %v456
    %v464 = vadd.f32 %v463, %v457
    %v465 = vadd.f32 %v464, %v458
    %v466 = vadd.f32 %v465, %v459
    %v467 = vadd.f32 %v466, %v460
    %v468 = vadd.f32 %v467, %v461
    %v469 = vrot.slane %v468, 4
    %v470 = vadd.f32 %v468, %v469
    %v471 = vrot.slane %v470, 2
    %v472 = vadd.f32 %v470, %v471
    %v473 = vrot.slane %v472, 1
    %v474 = vadd.f32 %v472, %v473
    %vm475 = vcmask 1040384
    %v476 = vsel %vm475, %v429, %v474
    %v477 = vld [vmem:[%s4] sm:$0x1]
    %v479 = vlaneseq
    %v480 = vshrl.u32 %v479, 7
    %v481 = vsub.s32 0, %v480
    %v482 = vrot.slane %v477, %v481
    %v484 = vadd.f32 %v476, %v482
    %485 = vst [vmem:[#allocation2] sm:$0x3] %v484
    // Predicated region
    $region22: #{gradcam_forward.1} parent=1 // pred_check
      _
    $region23: #{gradcam_forward.1} parent=1 // pred_check_branch
      %487 = sbr.rel (0) target = $region25
    $region24: #{gradcam_forward.1} parent=1 // pred_region
      %s489 = ssub.s32 32, 32
      %490 = vsyncadd [#allocation3], %s489
      %s492 = sshll.u32 [#allocation2], 4
      %s493 = int_to_ptr.vmem [resolvable:$true] %s492
      %495 = dma.vmem_to_hbm [thread:$0]  %s493, 32, %s5, [#allocation3]
    $region25: #{gradcam_forward.1} parent=1 // pred_fallthru
      _
    // Predicated region
    $region26: #{gradcam_forward.1} parent=1 // pred_check
      _
    $region27: #{gradcam_forward.1} parent=1 // pred_check_branch
      %497 = sbr.rel (0) target = $region29
    $region28: #{gradcam_forward.1} parent=1 // pred_region
      %498 = dma.done [#allocation3], 32
    $region29: #{gradcam_forward.1} parent=1 // pred_fallthru
      _
    %499 = vsyncpa [#allocation3], 1

</llo_original>
